<compile_context>
chip_gen: v5e
topology: v5e:2x2
jax: 0.10.0
libtpu: 0.0.40
codegen_flags: <defaults>
</compile_context>

<pallas_src>
from functools import partial
from types import SimpleNamespace

import jax
import jax.numpy as jnp
from jax import lax
from jax.experimental import pallas as pl
from jax.experimental.pallas import tpu as pltpu

# ---- module hyper-parameters (match SimMatch.__init__ defaults) -------------
NUM_CLASSES = 10
CW = 16            # internal class lane width (>= NUM_CLASSES + 1; loss packs at lane 10)
DIM = 128          # projection dim
K = 256            # bank size
MOMENTUM = 0.999   # EMA momentum


def _vmem():
    # whole-array block resident in VMEM (all operands here are < 1 MiB)
    return pl.BlockSpec(memory_space=pltpu.MemorySpace.VMEM)


def _round_up(n, m):
    return -(-n // m) * m


def _pad_rows(a, rows):
    pad = rows - a.shape[0]
    if pad == 0:
        return a
    return jnp.concatenate([a, jnp.zeros((pad,) + a.shape[1:], a.dtype)], axis=0)


# -----------------------------------------------------------------------------
# Fused kernel: backbone forward + unlabeled branch + _update_bank
#   bx, bu below are the 8-row-padded segment sizes.
# -----------------------------------------------------------------------------
def simmatch_fused_kernel(x_ref, we_ref, be_ref, wc_ref, bc_ref, wh2_ref, bh2_ref,
                          bank_ref, labels_bank_ref, index_ref, labels_x_ref,
                          logits_ref, unlabel_ref, bank_out_ref, labels_out_ref,
                          *, bx, bu, tt, st, c_smooth, bank_m, do_unlabel):
    f32 = jnp.float32
    bf16 = jnp.bfloat16

    # ---------------- BackBone (training mode) -------------------------------
    x = x_ref[...]                                                     # (B, F) bf16
    feat = jnp.maximum(
        jnp.dot(x, we_ref[...], preferred_element_type=f32) + be_ref[...], 0.0)
    # fc and head[0] share `feat` -> single MXU push through the fused bf16 weight
    combo = jnp.dot(feat.astype(bf16), wc_ref[...],
                    preferred_element_type=f32) + bc_ref[...]          # (B, CW+out_dim)
    cls = combo[:, :CW]                                                # class logits, (B, CW)
    h = jnp.maximum(combo[:, CW:], 0.0)
    emb = jnp.dot(h.astype(bf16), wh2_ref[...],
                  preferred_element_type=f32) + bh2_ref[...]           # (B, DIM)
    emb = emb * lax.rsqrt(jnp.maximum(
        jnp.sum(emb * emb, axis=1, keepdims=True), 1e-24))             # F.normalize(dim=1)
    logits_ref[...] = cls

    bank_bf = bank_ref[...]                                            # (DIM, K) bf16
    labels_bank = labels_bank_ref[...]                                 # (1, K) int32

    # -------- prob_u_w = softmax(logits_u_w) over the 10 real classes --------
    lane = lax.broadcasted_iota(jnp.int32, (bu, CW), 1)
    is_class = lane < NUM_CLASSES
    cls_u_w = cls[bx:bx + bu]                                          # aligned row slice
    lw = jnp.where(is_class, cls_u_w, -1e30)
    lw = lw - jnp.max(lw, axis=1, keepdims=True)
    ew = jnp.where(is_class, jnp.exp(lw), 0.0)
    prob_u_w = ew / jnp.sum(ew, axis=1, keepdims=True)                 # exact (returned)

    if do_unlabel:
        # teacher + student logits from a single stacked dot against the bank
        emb_u = emb[bx:]                                               # (2*bu, DIM)
        ts = jnp.dot(emb_u.astype(bf16), bank_bf,
                     preferred_element_type=f32)                       # (2*bu, K)
        t_logits = ts[:bu] * (1.0 / tt)
        s_logits = ts[bu:] * (1.0 / st)

        t_shift = t_logits - jnp.max(t_logits, axis=1, keepdims=True)
        t_exp = jnp.exp(t_shift)
        teacher_prob_orig = t_exp * pl.reciprocal(
            jnp.sum(t_exp, axis=1, keepdims=True), approx=True)        # (bu, K)

        # onehot[c, k] = (labels_bank[k] == c); only 16 class rows, bf16 (2 vregs)
        onehot = (labels_bank == lax.broadcasted_iota(
            jnp.int32, (CW, K), 0)).astype(bf16)                       # (CW, K)

        # factor[i, j] = prob_u_w[i, labels_bank[j]]   (torch.gather dim=1)
        factor = jnp.dot(prob_u_w.astype(bf16), onehot,
                         preferred_element_type=f32)                   # (bu, K)
        teacher_prob = teacher_prob_orig * factor
        teacher_prob = teacher_prob * pl.reciprocal(
            jnp.maximum(jnp.sum(teacher_prob, axis=1, keepdims=True), 1e-30),
            approx=True)

        # student loss via log-softmax (no log of underflowed probabilities)
        s_shift = s_logits - jnp.max(s_logits, axis=1, keepdims=True)
        log_student = s_shift - jnp.log(jnp.sum(jnp.exp(s_shift), axis=1, keepdims=True))
        loss = jnp.sum(-teacher_prob * log_student, axis=1, keepdims=True)   # (bu, 1)

        if c_smooth < 1.0:
            # scatter_add over classes == teacher_prob_orig @ onehot^T
            agg = lax.dot_general(teacher_prob_orig.astype(bf16), onehot,
                                  (((1,), (1,)), ((), ())),
                                  preferred_element_type=f32)          # (bu, CW)
            prob_out = prob_u_w * c_smooth + agg * (1.0 - c_smooth)
        else:
            prob_out = prob_u_w
    else:
        prob_out = prob_u_w
        loss = jnp.zeros((bu, 1), f32)

    # pack prob (lanes < 10) and loss (lane == 10) into one (bu, CW) slab
    unlabel_ref[...] = jnp.where(lane == NUM_CLASSES, loss, prob_out)

    # ------------- _update_bank (gather/scatter as one-hot MXU matmuls) ------
    emb_x = emb[:bx]                                                   # (bx, DIM)
    index = index_ref[...]                                             # (bx, 1) int32; pads hold K
    sel = (index == lax.broadcasted_iota(jnp.int32, (bx, K), 1)).astype(f32)
    sel_bf = sel.astype(bf16)
    gathered = lax.dot_general(sel_bf, bank_bf, (((1,), (1,)), ((), ())),
                               preferred_element_type=f32)             # (bx, DIM)
    valid = (index < K).astype(f32)                                    # zero out padded rows
    new_rows = (gathered * bank_m + emb_x * (1.0 - bank_m)) * valid
    # F.normalize default dim=1 on the (DIM, bx) slice == reduce over the bx axis here
    new_rows = new_rows * lax.rsqrt(jnp.maximum(
        jnp.sum(new_rows * new_rows, axis=0, keepdims=True), 1e-24))
    mask = jnp.sum(sel, axis=0, keepdims=True)                         # (1, K)
    scattered = lax.dot_general(new_rows.astype(bf16), sel_bf, (((0,), (0,)), ((), ())),
                                preferred_element_type=f32)            # (DIM, K)
    # TODO(synk): like the PyTorch in-place column assignment this assumes the
    # entries of `index` are unique within the batch.
    bank_out_ref[...] = (bank_bf.astype(f32) * (1.0 - mask) + scattered).astype(bf16)

    labels_col = labels_x_ref[...].astype(f32)                         # (bx, 1)
    lab_scatter = jnp.sum(labels_col * sel, axis=0, keepdims=True)     # (1, K)
    labels_out_ref[...] = (labels_bank.astype(f32) * (1.0 - mask)
                           + lab_scatter).astype(jnp.int32)


# -----------------------------------------------------------------------------
# One-time parameter preparation (hoisted out of the per-step forward).
# Re-run only when q_params change (e.g. after an optimizer step).
# -----------------------------------------------------------------------------
def prepare_kernel_params(q_params):
    out_dim = q_params["w_enc"].shape[1]
    w_fc_pad = jnp.zeros((out_dim, CW), jnp.float32).at[:, :NUM_CLASSES].set(q_params["w_fc"])
    b_fc_pad = jnp.zeros((1, CW), jnp.float32).at[:, :NUM_CLASSES].set(q_params["b_fc"])
    return {
        "w_enc":   q_params["w_enc"].astype(jnp.bfloat16),
        "b_enc":   q_params["b_enc"],
        "w_combo": jnp.concatenate([w_fc_pad, q_params["w_h1"]], axis=1).astype(jnp.bfloat16),
        "b_combo": jnp.concatenate([b_fc_pad, q_params["b_h1"]], axis=1),
        "w_h2":    q_params["w_h2"].astype(jnp.bfloat16),
        "b_h2":    q_params["b_h2"],
    }


# -----------------------------------------------------------------------------
# SimMatch.forward wrapper
# -----------------------------------------------------------------------------
def simmatch_forward(state, im_x, im_u_w, im_u_s, labels, index,
                     start_unlabel, args):
    # momentum_update_ema: pure elementwise EMA over parameters (plain JAX glue)
    m = MOMENTUM
    ema_new = jax.tree_util.tree_map(
        lambda e, q: e * m + q * (1.0 - m), state["ema_params"], state["q_params"])

    if args.DA:
        # TODO(synk): distribution_alignment needs a persistent DA_queue/DA_ptr
        # buffer and torch.distributed.all_reduce; not reproduced here.
        raise NotImplementedError("args.DA=True path not implemented")

    bx = im_x.shape[0]
    bu = im_u_w.shape[0]
    bx_p = _round_up(bx, 8)          # 8-row (sublane) aligned segments
    bu_p = _round_up(bu, 8)
    B_p = bx_p + 2 * bu_p

    flat = lambda a, r: _pad_rows(a.reshape(a.shape[0], -1), r)
    x_flat = jnp.concatenate([flat(im_x, bx_p), flat(im_u_w, bu_p), flat(im_u_s, bu_p)],
                             axis=0).astype(jnp.bfloat16)
    in_features = x_flat.shape[1]

    prep = state["prep"]
    out_dim = prep["w_enc"].shape[1]
    bank = state["bank"]                                   # (DIM, K) bf16
    labels_bank = state["labels"].reshape(1, K).astype(jnp.int32)
    # padded rows get index=K (matches nothing) / label=0 (never scattered)
    index_p = jnp.full((bx_p, 1), K, jnp.int32).at[:bx, 0].set(index.astype(jnp.int32))
    labels_p = jnp.zeros((bx_p, 1), jnp.int32).at[:bx, 0].set(labels.astype(jnp.int32))

    # advisory cost estimate so XLA schedules the surrounding glue around the call
    flops = 2 * B_p * (in_features * out_dim + out_dim * (CW + out_dim) + out_dim * DIM)
    flops += 2 * (2 * bu_p) * DIM * K + 2 * 2 * bu_p * CW * K + 2 * bx_p * K * (2 * DIM + 1)
    transcendentals = bu_p * CW + 3 * bu_p * K + B_p + DIM + 2 * bu_p
    operands = (x_flat, prep["w_enc"], prep["b_enc"], prep["w_combo"], prep["b_combo"],
                prep["w_h2"], prep["b_h2"], bank, labels_bank, index_p, labels_p)
    bytes_accessed = sum(int(a.size) * a.dtype.itemsize for a in operands)
    bytes_accessed += 4 * (B_p * CW + bu_p * CW) + 2 * DIM * K + 4 * K

    kernel = partial(simmatch_fused_kernel, bx=bx_p, bu=bu_p,
                     tt=float(args.tt), st=float(args.st),
                     c_smooth=float(args.c_smooth), bank_m=float(args.bank_m),
                     do_unlabel=bool(start_unlabel))

    logits_out, unlabel_out, bank_new, labels_new = pl.pallas_call(
        kernel,
        out_shape=(jax.ShapeDtypeStruct((B_p, CW), jnp.float32),
                   jax.ShapeDtypeStruct((bu_p, CW), jnp.float32),
                   jax.ShapeDtypeStruct((DIM, K), jnp.bfloat16),
                   jax.ShapeDtypeStruct((1, K), jnp.int32)),
        in_specs=[_vmem() for _ in range(11)],
        out_specs=(_vmem(), _vmem(), _vmem(), _vmem()),
        input_output_aliases={7: 2, 8: 3},     # bank, labels updated in place
        cost_estimate=pl.CostEstimate(flops=int(flops),
                                      transcendentals=int(transcendentals),
                                      bytes_accessed=int(bytes_accessed)),
    )(*operands)

    logits_x = logits_out[:bx, :NUM_CLASSES]
    logits_u_s = logits_out[bx_p + bu_p: bx_p + bu_p + bu, :NUM_CLASSES]
    prob_u_w = unlabel_out[:bu, :NUM_CLASSES]
    if start_unlabel:
        loss_in = unlabel_out[:bu, NUM_CLASSES]
    else:
        loss_in = jnp.float32(0.0)   # matches torch.tensor(0.) in the original

    new_state = dict(state)
    new_state["ema_params"] = ema_new
    new_state["bank"] = bank_new
    new_state["labels"] = labels_new.reshape(K)
    return (logits_x, prob_u_w, logits_u_s, loss_in), new_state


# -----------------------------------------------------------------------------
# deterministic parameter / buffer init
# -----------------------------------------------------------------------------
def init_state(key, in_features, out_dim):
    ks = jax.random.split(key, 6)
    s = 0.02
    q_params = {
        "w_enc": s * jax.random.normal(ks[0], (in_features, out_dim), jnp.float32),
        "b_enc": jnp.zeros((1, out_dim), jnp.float32),
        "w_fc":  s * jax.random.normal(ks[1], (out_dim, NUM_CLASSES), jnp.float32),
        "b_fc":  jnp.zeros((1, NUM_CLASSES), jnp.float32),
        "w_h1":  s * jax.random.normal(ks[2], (out_dim, out_dim), jnp.float32),
        "b_h1":  jnp.zeros((1, out_dim), jnp.float32),
        "w_h2":  s * jax.random.normal(ks[3], (out_dim, DIM), jnp.float32),
        "b_h2":  jnp.zeros((1, DIM), jnp.float32),
    }
    ema_params = jax.tree_util.tree_map(lambda p: p, q_params)   # deepcopy of encoder_q
    bank = jax.random.normal(ks[4], (DIM, K), jnp.float32)
    bank = bank / jnp.maximum(
        jnp.sqrt(jnp.sum(bank * bank, axis=0, keepdims=True)), 1e-12)  # normalize dim=0
    return {
        "q_params": q_params,
        "ema_params": ema_params,
        "prep": prepare_kernel_params(q_params),   # fused/bf16 weights, hoisted out of forward
        "bank": bank.astype(jnp.bfloat16),         # bank stored & DMA'd as bf16
        "labels": jnp.zeros((K,), jnp.int32),
    }


if __name__ == "__main__":
    key = jax.random.PRNGKey(0)
    k_img, k_lab, k_params = jax.random.split(key, 3)

    bx, bu = 4, 4
    c_in, h, w = 3, 8, 8
    in_features = c_in * h * w
    out_dim = 32                      # base_encoder.out_dim
    # TODO(synk): base_encoder is an external module; stood in by one Linear+ReLU.

    kx, kw, ks_ = jax.random.split(k_img, 3)
    im_x = jax.random.normal(kx, (bx, c_in, h, w), jnp.float32)    # NCHW
    im_u_w = jax.random.normal(kw, (bu, c_in, h, w), jnp.float32)
    im_u_s = jax.random.normal(ks_, (bu, c_in, h, w), jnp.float32)
    labels = jax.random.randint(k_lab, (bx,), 0, NUM_CLASSES, jnp.int32)
    index = jnp.array([3, 50, 100, 200], jnp.int32)                # unique bank slots

    args = SimpleNamespace(DA=False, tt=0.1, st=0.1, c_smooth=0.9, bank_m=0.99)

    state = init_state(k_params, in_features, out_dim)

    (logits_x, prob_u_w, logits_u_s, loss_in), new_state = simmatch_forward(
        state, im_x, im_u_w, im_u_s, labels, index, start_unlabel=True, args=args)

    jax.block_until_ready((logits_x, prob_u_w, logits_u_s, loss_in,
                           new_state["bank"], new_state["labels"]))

    assert logits_x.shape == (bx, NUM_CLASSES)
    assert prob_u_w.shape == (bu, NUM_CLASSES)
    assert logits_u_s.shape == (bu, NUM_CLASSES)
    assert loss_in.shape == (bu,)
    assert bool(jnp.all(jnp.isfinite(loss_in)))
    assert bool(jnp.all(jnp.isfinite(prob_u_w)))
    assert new_state["bank"].shape == (DIM, K)
    assert new_state["labels"].shape == (K,)
    print("KERNEL_OK")
</pallas_src>

<mosaic_0001>
module attributes {stable_mosaic.version = 11 : i64} {
  func.func @simmatch_fused_kernel(%arg0: memref<24x192xbf16, #tpu.memory_space<vmem>>, %arg1: memref<192x32xbf16, #tpu.memory_space<vmem>>, %arg2: memref<1x32xf32, #tpu.memory_space<vmem>>, %arg3: memref<32x48xbf16, #tpu.memory_space<vmem>>, %arg4: memref<1x48xf32, #tpu.memory_space<vmem>>, %arg5: memref<32x128xbf16, #tpu.memory_space<vmem>>, %arg6: memref<1x128xf32, #tpu.memory_space<vmem>>, %arg7: memref<128x256xbf16, #tpu.memory_space<vmem>>, %arg8: memref<1x256xi32, #tpu.memory_space<vmem>>, %arg9: memref<8x1xi32, #tpu.memory_space<vmem>>, %arg10: memref<8x1xi32, #tpu.memory_space<vmem>>, %arg11: memref<24x16xf32, #tpu.memory_space<vmem>>, %arg12: memref<8x16xf32, #tpu.memory_space<vmem>>, %arg13: memref<128x256xbf16, #tpu.memory_space<vmem>>, %arg14: memref<1x256xi32, #tpu.memory_space<vmem>>) attributes {dimension_semantics = [], scalar_prefetch = 0 : i64, scratch_operands = 0 : i64, tpu.core_type = #tpu.core_type<tc>} {
    %c0 = arith.constant 0 : index
    %c0_0 = arith.constant 0 : index
    %0 = vector.load %arg0[%c0, %c0_0] : memref<24x192xbf16, #tpu.memory_space<vmem>>, vector<24x192xbf16>
    %c0_1 = arith.constant 0 : index
    %c0_2 = arith.constant 0 : index
    %1 = vector.load %arg1[%c0_1, %c0_2] : memref<192x32xbf16, #tpu.memory_space<vmem>>, vector<192x32xbf16>
    %cst = arith.constant dense<0.000000e+00> : vector<24x32xf32>
    %2 = tpu.matmul %0, %1, %cst {dimension_numbers = #tpu.dot_dimension_numbers<[1], [0], [0], [1], [0, 0, 1, 1], [], []>} : vector<24x192xbf16>, vector<192x32xbf16>, vector<24x32xf32> -> vector<24x32xf32>
    %c0_3 = arith.constant 0 : index
    %c0_4 = arith.constant 0 : index
    %3 = vector.load %arg2[%c0_3, %c0_4] : memref<1x32xf32, #tpu.memory_space<vmem>>, vector<1x32xf32>
    %4 = vector.broadcast %3 : vector<1x32xf32> to vector<24x32xf32>
    %5 = arith.addf %2, %4 : vector<24x32xf32>
    %cst_5 = arith.constant 0.000000e+00 : f32
    %6 = vector.broadcast %cst_5 : f32 to vector<24x32xf32>
    %7 = arith.maximumf %5, %6 : vector<24x32xf32>
    %8 = arith.truncf %7 : vector<24x32xf32> to vector<24x32xbf16>
    %c0_6 = arith.constant 0 : index
    %c0_7 = arith.constant 0 : index
    %9 = vector.load %arg3[%c0_6, %c0_7] : memref<32x48xbf16, #tpu.memory_space<vmem>>, vector<32x48xbf16>
    %cst_8 = arith.constant dense<0.000000e+00> : vector<24x48xf32>
    %10 = tpu.matmul %8, %9, %cst_8 {dimension_numbers = #tpu.dot_dimension_numbers<[1], [0], [0], [1], [0, 0, 1, 1], [], []>} : vector<24x32xbf16>, vector<32x48xbf16>, vector<24x48xf32> -> vector<24x48xf32>
    %c0_9 = arith.constant 0 : index
    %c0_10 = arith.constant 0 : index
    %11 = vector.load %arg4[%c0_9, %c0_10] : memref<1x48xf32, #tpu.memory_space<vmem>>, vector<1x48xf32>
    %12 = vector.broadcast %11 : vector<1x48xf32> to vector<24x48xf32>
    %13 = arith.addf %10, %12 : vector<24x48xf32>
    %14 = vector.extract_strided_slice %13 {offsets = [0, 0], sizes = [24, 16], strides = [1, 1]} : vector<24x48xf32> to vector<24x16xf32>
    %15 = vector.extract_strided_slice %13 {offsets = [0, 16], sizes = [24, 32], strides = [1, 1]} : vector<24x48xf32> to vector<24x32xf32>
    %cst_11 = arith.constant 0.000000e+00 : f32
    %16 = vector.broadcast %cst_11 : f32 to vector<24x32xf32>
    %17 = arith.maximumf %15, %16 : vector<24x32xf32>
    %18 = arith.truncf %17 : vector<24x32xf32> to vector<24x32xbf16>
    %c0_12 = arith.constant 0 : index
    %c0_13 = arith.constant 0 : index
    %19 = vector.load %arg5[%c0_12, %c0_13] : memref<32x128xbf16, #tpu.memory_space<vmem>>, vector<32x128xbf16>
    %cst_14 = arith.constant dense<0.000000e+00> : vector<24x128xf32>
    %20 = tpu.matmul %18, %19, %cst_14 {dimension_numbers = #tpu.dot_dimension_numbers<[1], [0], [0], [1], [0, 0, 1, 1], [], []>} : vector<24x32xbf16>, vector<32x128xbf16>, vector<24x128xf32> -> vector<24x128xf32>
    %c0_15 = arith.constant 0 : index
    %c0_16 = arith.constant 0 : index
    %21 = vector.load %arg6[%c0_15, %c0_16] : memref<1x128xf32, #tpu.memory_space<vmem>>, vector<1x128xf32>
    %22 = vector.broadcast %21 : vector<1x128xf32> to vector<24x128xf32>
    %23 = arith.addf %20, %22 : vector<24x128xf32>
    %24 = arith.mulf %23, %23 : vector<24x128xf32>
    %cst_17 = arith.constant dense<0.000000e+00> : vector<24xf32>
    %25 = vector.multi_reduction <add>, %24, %cst_17 [1] : vector<24x128xf32> to vector<24xf32>
    %26 = vector.shape_cast %25 : vector<24xf32> to vector<24x1xf32>
    %cst_18 = arith.constant 1.000000e-24 : f32
    %27 = vector.broadcast %cst_18 : f32 to vector<24x1xf32>
    %28 = arith.maximumf %26, %27 : vector<24x1xf32>
    %29 = math.rsqrt %28 : vector<24x1xf32>
    %30 = vector.broadcast %29 : vector<24x1xf32> to vector<24x128xf32>
    %31 = arith.mulf %23, %30 : vector<24x128xf32>
    %c0_19 = arith.constant 0 : index
    %c0_20 = arith.constant 0 : index
    %32 = vector.load %arg11[%c0_19, %c0_20] : memref<24x16xf32, #tpu.memory_space<vmem>>, vector<24x16xf32>
    tpu.vector_store %arg11[%c0_19, %c0_20], %14 {strides = array<i32>} : memref<24x16xf32, #tpu.memory_space<vmem>>, vector<24x16xf32>,
    %c0_21 = arith.constant 0 : index
    %c0_22 = arith.constant 0 : index
    %33 = vector.load %arg7[%c0_21, %c0_22] : memref<128x256xbf16, #tpu.memory_space<vmem>>, vector<128x256xbf16>
    %c0_23 = arith.constant 0 : index
    %c0_24 = arith.constant 0 : index
    %34 = vector.load %arg8[%c0_23, %c0_24] : memref<1x256xi32, #tpu.memory_space<vmem>>, vector<1x256xi32>
    %35 = tpu.iota {dimensions = array<i32: 1>} : vector<8x16xi32>
    %c10_i32 = arith.constant 10 : i32
    %36 = vector.broadcast %c10_i32 : i32 to vector<8x16xi32>
    %37 = arith.cmpi slt, %35, %36 : vector<8x16xi32>
    %38 = vector.extract_strided_slice %14 {offsets = [8, 0], sizes = [8, 16], strides = [1, 1]} : vector<24x16xf32> to vector<8x16xf32>
    %cst_25 = arith.constant -1.000000e+30 : f32
    %39 = vector.broadcast %cst_25 : f32 to vector<8x16xf32>
    %40 = arith.select %37, %38, %39 : vector<8x16xi1>, vector<8x16xf32>
    %cst_26 = arith.constant dense<0xFF800000> : vector<8xf32>
    %41 = vector.multi_reduction <maximumf>, %40, %cst_26 [1] : vector<8x16xf32> to vector<8xf32>
    %42 = vector.shape_cast %41 : vector<8xf32> to vector<8x1xf32>
    %43 = vector.broadcast %42 : vector<8x1xf32> to vector<8x16xf32>
    %44 = arith.subf %40, %43 : vector<8x16xf32>
    %45 = math.exp %44 : vector<8x16xf32>
    %cst_27 = arith.constant 0.000000e+00 : f32
    %46 = vector.broadcast %cst_27 : f32 to vector<8x16xf32>
    %47 = arith.select %37, %45, %46 : vector<8x16xi1>, vector<8x16xf32>
    %cst_28 = arith.constant dense<0.000000e+00> : vector<8xf32>
    %48 = vector.multi_reduction <add>, %47, %cst_28 [1] : vector<8x16xf32> to vector<8xf32>
    %49 = vector.shape_cast %48 : vector<8xf32> to vector<8x1xf32>
    %50 = vector.broadcast %49 : vector<8x1xf32> to vector<8x16xf32>
    %51 = arith.divf %47, %50 : vector<8x16xf32>
    %52 = vector.extract_strided_slice %31 {offsets = [8, 0], sizes = [16, 128], strides = [1, 1]} : vector<24x128xf32> to vector<16x128xf32>
    %53 = arith.truncf %52 : vector<16x128xf32> to vector<16x128xbf16>
    %cst_29 = arith.constant dense<0.000000e+00> : vector<16x256xf32>
    %54 = tpu.matmul %53, %33, %cst_29 {dimension_numbers = #tpu.dot_dimension_numbers<[1], [0], [0], [1], [0, 0, 1, 1], [], []>} : vector<16x128xbf16>, vector<128x256xbf16>, vector<16x256xf32> -> vector<16x256xf32>
    %55 = vector.extract_strided_slice %54 {offsets = [0, 0], sizes = [8, 256], strides = [1, 1]} : vector<16x256xf32> to vector<8x256xf32>
    %cst_30 = arith.constant 1.000000e+01 : f32
    %56 = vector.broadcast %cst_30 : f32 to vector<8x256xf32>
    %57 = arith.mulf %55, %56 : vector<8x256xf32>
    %58 = vector.extract_strided_slice %54 {offsets = [8, 0], sizes = [8, 256], strides = [1, 1]} : vector<16x256xf32> to vector<8x256xf32>
    %cst_31 = arith.constant 1.000000e+01 : f32
    %59 = vector.broadcast %cst_31 : f32 to vector<8x256xf32>
    %60 = arith.mulf %58, %59 : vector<8x256xf32>
    %cst_32 = arith.constant dense<0xFF800000> : vector<8xf32>
    %61 = vector.multi_reduction <maximumf>, %57, %cst_32 [1] : vector<8x256xf32> to vector<8xf32>
    %62 = vector.shape_cast %61 : vector<8xf32> to vector<8x1xf32>
    %63 = vector.broadcast %62 : vector<8x1xf32> to vector<8x256xf32>
    %64 = arith.subf %57, %63 : vector<8x256xf32>
    %65 = math.exp %64 : vector<8x256xf32>
    %cst_33 = arith.constant dense<0.000000e+00> : vector<8xf32>
    %66 = vector.multi_reduction <add>, %65, %cst_33 [1] : vector<8x256xf32> to vector<8xf32>
    %67 = vector.shape_cast %66 : vector<8xf32> to vector<8x1xf32>
    %68 = tpu.reciprocal %67 {approx = true} : vector<8x1xf32> -> vector<8x1xf32>
    %69 = vector.broadcast %68 : vector<8x1xf32> to vector<8x256xf32>
    %70 = arith.mulf %65, %69 : vector<8x256xf32>
    %71 = tpu.iota {dimensions = array<i32: 0>} : vector<16x256xi32>
    %72 = vector.broadcast %34 : vector<1x256xi32> to vector<16x256xi32>
    %73 = arith.cmpi eq, %72, %71 : vector<16x256xi32>
    %74 = arith.extui %73 : vector<16x256xi1> to vector<16x256xi32>
    %75 = arith.sitofp %74 : vector<16x256xi32> to vector<16x256xf32>
    %76 = arith.truncf %75 : vector<16x256xf32> to vector<16x256xbf16>
    %77 = arith.truncf %51 : vector<8x16xf32> to vector<8x16xbf16>
    %cst_34 = arith.constant dense<0.000000e+00> : vector<8x256xf32>
    %78 = tpu.matmul %77, %76, %cst_34 {dimension_numbers = #tpu.dot_dimension_numbers<[1], [0], [0], [1], [0, 0, 1, 1], [], []>} : vector<8x16xbf16>, vector<16x256xbf16>, vector<8x256xf32> -> vector<8x256xf32>
    %79 = arith.mulf %70, %78 : vector<8x256xf32>
    %cst_35 = arith.constant dense<0.000000e+00> : vector<8xf32>
    %80 = vector.multi_reduction <add>, %79, %cst_35 [1] : vector<8x256xf32> to vector<8xf32>
    %81 = vector.shape_cast %80 : vector<8xf32> to vector<8x1xf32>
    %cst_36 = arith.constant 1.000000e-30 : f32
    %82 = vector.broadcast %cst_36 : f32 to vector<8x1xf32>
    %83 = arith.maximumf %81, %82 : vector<8x1xf32>
    %84 = tpu.reciprocal %83 {approx = true} : vector<8x1xf32> -> vector<8x1xf32>
    %85 = vector.broadcast %84 : vector<8x1xf32> to vector<8x256xf32>
    %86 = arith.mulf %79, %85 : vector<8x256xf32>
    %cst_37 = arith.constant dense<0xFF800000> : vector<8xf32>
    %87 = vector.multi_reduction <maximumf>, %60, %cst_37 [1] : vector<8x256xf32> to vector<8xf32>
    %88 = vector.shape_cast %87 : vector<8xf32> to vector<8x1xf32>
    %89 = vector.broadcast %88 : vector<8x1xf32> to vector<8x256xf32>
    %90 = arith.subf %60, %89 : vector<8x256xf32>
    %91 = math.exp %90 : vector<8x256xf32>
    %cst_38 = arith.constant dense<0.000000e+00> : vector<8xf32>
    %92 = vector.multi_reduction <add>, %91, %cst_38 [1] : vector<8x256xf32> to vector<8xf32>
    %93 = vector.shape_cast %92 : vector<8xf32> to vector<8x1xf32>
    %94 = math.log %93 : vector<8x1xf32>
    %95 = vector.broadcast %94 : vector<8x1xf32> to vector<8x256xf32>
    %96 = arith.subf %90, %95 : vector<8x256xf32>
    %cst_39 = arith.constant 0.000000e+00 : f32
    %97 = vector.broadcast %cst_39 : f32 to vector<8x256xf32>
    %98 = arith.subf %97, %86 : vector<8x256xf32>
    %99 = arith.mulf %98, %96 : vector<8x256xf32>
    %cst_40 = arith.constant dense<0.000000e+00> : vector<8xf32>
    %100 = vector.multi_reduction <add>, %99, %cst_40 [1] : vector<8x256xf32> to vector<8xf32>
    %101 = vector.shape_cast %100 : vector<8xf32> to vector<8x1xf32>
    %102 = arith.truncf %70 : vector<8x256xf32> to vector<8x256xbf16>
    %cst_41 = arith.constant dense<0.000000e+00> : vector<8x16xf32>
    %103 = tpu.matmul %102, %76, %cst_41 {dimension_numbers = #tpu.dot_dimension_numbers<[1], [1], [0], [0], [0, 0, 1, 0], [], []>} : vector<8x256xbf16>, vector<16x256xbf16>, vector<8x16xf32> -> vector<8x16xf32>
    %cst_42 = arith.constant 0.899999976 : f32
    %104 = vector.broadcast %cst_42 : f32 to vector<8x16xf32>
    %105 = arith.mulf %51, %104 : vector<8x16xf32>
    %cst_43 = arith.constant 1.000000e-01 : f32
    %106 = vector.broadcast %cst_43 : f32 to vector<8x16xf32>
    %107 = arith.mulf %103, %106 : vector<8x16xf32>
    %108 = arith.addf %105, %107 : vector<8x16xf32>
    %c10_i32_44 = arith.constant 10 : i32
    %109 = vector.broadcast %c10_i32_44 : i32 to vector<8x16xi32>
    %110 = arith.cmpi eq, %35, %109 : vector<8x16xi32>
    %111 = vector.shape_cast %101 : vector<8x1xf32> to vector<8x1xf32>
    %112 = vector.broadcast %111 : vector<8x1xf32> to vector<8x16xf32>
    %113 = arith.select %110, %112, %108 : vector<8x16xi1>, vector<8x16xf32>
    %c0_45 = arith.constant 0 : index
    %c0_46 = arith.constant 0 : index
    %114 = vector.load %arg12[%c0_45, %c0_46] : memref<8x16xf32, #tpu.memory_space<vmem>>, vector<8x16xf32>
    tpu.vector_store %arg12[%c0_45, %c0_46], %113 {strides = array<i32>} : memref<8x16xf32, #tpu.memory_space<vmem>>, vector<8x16xf32>,
    %115 = vector.extract_strided_slice %31 {offsets = [0, 0], sizes = [8, 128], strides = [1, 1]} : vector<24x128xf32> to vector<8x128xf32>
    %c0_47 = arith.constant 0 : index
    %c0_48 = arith.constant 0 : index
    %116 = vector.load %arg9[%c0_47, %c0_48] : memref<8x1xi32, #tpu.memory_space<vmem>>, vector<8x1xi32>
    %117 = tpu.iota {dimensions = array<i32: 1>} : vector<8x256xi32>
    %118 = vector.broadcast %116 : vector<8x1xi32> to vector<8x256xi32>
    %119 = arith.cmpi eq, %118, %117 : vector<8x256xi32>
    %120 = arith.extui %119 : vector<8x256xi1> to vector<8x256xi32>
    %121 = arith.sitofp %120 : vector<8x256xi32> to vector<8x256xf32>
    %122 = arith.truncf %121 : vector<8x256xf32> to vector<8x256xbf16>
    %cst_49 = arith.constant dense<0.000000e+00> : vector<8x128xf32>
    %123 = tpu.matmul %122, %33, %cst_49 {dimension_numbers = #tpu.dot_dimension_numbers<[1], [1], [0], [0], [0, 0, 1, 0], [], []>} : vector<8x256xbf16>, vector<128x256xbf16>, vector<8x128xf32> -> vector<8x128xf32>
    %c256_i32 = arith.constant 256 : i32
    %124 = vector.broadcast %c256_i32 : i32 to vector<8x1xi32>
    %125 = arith.cmpi slt, %116, %124 : vector<8x1xi32>
    %126 = arith.extui %125 : vector<8x1xi1> to vector<8x1xi32>
    %127 = arith.sitofp %126 : vector<8x1xi32> to vector<8x1xf32>
    %cst_50 = arith.constant 9.900000e-01 : f32
    %128 = vector.broadcast %cst_50 : f32 to vector<8x128xf32>
    %129 = arith.mulf %123, %128 : vector<8x128xf32>
    %cst_51 = arith.constant 0.00999999977 : f32
    %130 = vector.broadcast %cst_51 : f32 to vector<8x128xf32>
    %131 = arith.mulf %115, %130 : vector<8x128xf32>
    %132 = arith.addf %129, %131 : vector<8x128xf32>
    %133 = vector.broadcast %127 : vector<8x1xf32> to vector<8x128xf32>
    %134 = arith.mulf %132, %133 : vector<8x128xf32>
    %135 = arith.mulf %134, %134 : vector<8x128xf32>
    %cst_52 = arith.constant dense<0.000000e+00> : vector<128xf32>
    %136 = vector.multi_reduction <add>, %135, %cst_52 [0] : vector<8x128xf32> to vector<128xf32>
    %137 = vector.shape_cast %136 : vector<128xf32> to vector<1x128xf32>
    %cst_53 = arith.constant 1.000000e-24 : f32
    %138 = vector.broadcast %cst_53 : f32 to vector<1x128xf32>
    %139 = arith.maximumf %137, %138 : vector<1x128xf32>
    %140 = math.rsqrt %139 : vector<1x128xf32>
    %141 = vector.broadcast %140 : vector<1x128xf32> to vector<8x128xf32>
    %142 = arith.mulf %134, %141 : vector<8x128xf32>
    %cst_54 = arith.constant dense<0.000000e+00> : vector<256xf32>
    %143 = vector.multi_reduction <add>, %121, %cst_54 [0] : vector<8x256xf32> to vector<256xf32>
    %144 = vector.shape_cast %143 : vector<256xf32> to vector<1x256xf32>
    %145 = arith.truncf %142 : vector<8x128xf32> to vector<8x128xbf16>
    %cst_55 = arith.constant dense<0.000000e+00> : vector<128x256xf32>
    %146 = tpu.matmul %145, %122, %cst_55 {dimension_numbers = #tpu.dot_dimension_numbers<[0], [0], [1], [1], [0, 1, 1, 1], [], []>} : vector<8x128xbf16>, vector<8x256xbf16>, vector<128x256xf32> -> vector<128x256xf32>
    %147 = arith.extf %33 : vector<128x256xbf16> to vector<128x256xf32>
    %cst_56 = arith.constant 1.000000e+00 : f32
    %148 = vector.broadcast %cst_56 : f32 to vector<1x256xf32>
    %149 = arith.subf %148, %144 : vector<1x256xf32>
    %150 = vector.broadcast %149 : vector<1x256xf32> to vector<128x256xf32>
    %151 = arith.mulf %147, %150 : vector<128x256xf32>
    %152 = arith.addf %151, %146 : vector<128x256xf32>
    %153 = arith.truncf %152 : vector<128x256xf32> to vector<128x256xbf16>
    %c0_57 = arith.constant 0 : index
    %c0_58 = arith.constant 0 : index
    %154 = vector.load %arg13[%c0_57, %c0_58] : memref<128x256xbf16, #tpu.memory_space<vmem>>, vector<128x256xbf16>
    tpu.vector_store %arg13[%c0_57, %c0_58], %153 {strides = array<i32>} : memref<128x256xbf16, #tpu.memory_space<vmem>>, vector<128x256xbf16>,
    %c0_59 = arith.constant 0 : index
    %c0_60 = arith.constant 0 : index
    %155 = vector.load %arg10[%c0_59, %c0_60] : memref<8x1xi32, #tpu.memory_space<vmem>>, vector<8x1xi32>
    %156 = arith.sitofp %155 : vector<8x1xi32> to vector<8x1xf32>
    %157 = vector.broadcast %156 : vector<8x1xf32> to vector<8x256xf32>
    %158 = arith.mulf %157, %121 : vector<8x256xf32>
    %cst_61 = arith.constant dense<0.000000e+00> : vector<256xf32>
    %159 = vector.multi_reduction <add>, %158, %cst_61 [0] : vector<8x256xf32> to vector<256xf32>
    %160 = vector.shape_cast %159 : vector<256xf32> to vector<1x256xf32>
    %161 = arith.sitofp %34 : vector<1x256xi32> to vector<1x256xf32>
    %cst_62 = arith.constant 1.000000e+00 : f32
    %162 = vector.broadcast %cst_62 : f32 to vector<1x256xf32>
    %163 = arith.subf %162, %144 : vector<1x256xf32>
    %164 = arith.mulf %161, %163 : vector<1x256xf32>
    %165 = arith.addf %164, %160 : vector<1x256xf32>
    %166 = arith.fptosi %165 : vector<1x256xf32> to vector<1x256xi32>
    %c0_63 = arith.constant 0 : index
    %c0_64 = arith.constant 0 : index
    %167 = vector.load %arg14[%c0_63, %c0_64] : memref<1x256xi32, #tpu.memory_space<vmem>>, vector<1x256xi32>
    tpu.vector_store %arg14[%c0_63, %c0_64], %166 {strides = array<i32>} : memref<1x256xi32, #tpu.memory_space<vmem>>, vector<1x256xi32>,
    return
  }
}

</mosaic_0001>

<llo_original>
// kernel: tpu_custom_call.1
$region0: #{tpu_custom_call.1}
  #allocation0 [shape = 'u32[]', space=smem, size = 0x4, offset = 0x4, fixed_abs, tag = 'smem constant byte address 0x4 - core index']
  #allocation1 [shape = 'u32[72,128]{1,0:T(1,128)}', space=vmem, size = 0x9000, scoped, tag = 'internal scratch']
  %s0 = inlined_call_operand.vmem [shape: bf16[24,192], index: 0, kind: input, shape index: {}]
  %s1 = inlined_call_operand.vmem [shape: bf16[192,32], index: 1, kind: input, shape index: {}]
  %s2 = inlined_call_operand.vmem [shape: f32[1,32], index: 2, kind: input, shape index: {}]
  %s3 = inlined_call_operand.vmem [shape: bf16[32,48], index: 3, kind: input, shape index: {}]
  %s4 = inlined_call_operand.vmem [shape: f32[1,48], index: 4, kind: input, shape index: {}]
  %s5 = inlined_call_operand.vmem [shape: bf16[32,128], index: 5, kind: input, shape index: {}]
  %s6 = inlined_call_operand.vmem [shape: f32[1,128], index: 6, kind: input, shape index: {}]
  %s7 = inlined_call_operand.vmem [shape: bf16[128,256], index: 7, kind: input, shape index: {}, may-alias: {7,13}]
  %s8 = inlined_call_operand.vmem [shape: s32[1,256], index: 8, kind: input, shape index: {}, may-alias: {8,14}]
  %s9 = inlined_call_operand.vmem [shape: s32[8,1], index: 9, kind: input, shape index: {}]
  %s10 = inlined_call_operand.vmem [shape: s32[8,1], index: 10, kind: input, shape index: {}]
  %s11 = inlined_call_operand.vmem [shape: f32[24,16], index: 11, kind: output, shape index: {0}]
  %s12 = inlined_call_operand.hbm [shape: f32[8,16], index: 12, kind: output, shape index: {1}]
  %s13 = inlined_call_operand.vmem [shape: bf16[128,256], index: 13, kind: output, shape index: {2}, may-alias: {7,13}]
  %s14 = inlined_call_operand.vmem [shape: s32[1,256], index: 14, kind: output, shape index: {3}, may-alias: {8,14}]
  %15 = xla_tuple %s11, %s12, %s13, %s14
  %s16 = sld [smem:[#allocation0]]
  $region78: #{tpu_custom_call.1} parent=0
    _
  %s18 = ssub.s32 1, %s16
  %s19 = scalar_select 0, %s18, %s16
  $region1: #{tpu_custom_call.1} parent=0
    #allocation2 [shape = 'u8[4096]{0}', space=vmem, size = 0x1000, scoped, tag = 'output window, operand 1, single buffered']
    #allocation3 [shape = 's32[1]{0}', space=sflag, size = 0x4, scoped, tag = 'scoped memory for tpu_custom_call.1']
    %20 = vsyncpa [#allocation3], 0
    // Predicated region
    $region2: #{tpu_custom_call.1} parent=1 // pred_check
      _
    $region3: #{tpu_custom_call.1} parent=1 // pred_check_branch
      %22 = sbr.rel (0) target = $region5
    $region4: #{tpu_custom_call.1} parent=1 // pred_region
      _
    $region5: #{tpu_custom_call.1} parent=1 // pred_fallthru
      _
    // Predicated region
    $region6: #{tpu_custom_call.1} parent=1 // pred_check
      _
    $region7: #{tpu_custom_call.1} parent=1 // pred_check_branch
      %24 = sbr.rel (0) target = $region9
    $region8: #{tpu_custom_call.1} parent=1 // pred_region
      _
    $region9: #{tpu_custom_call.1} parent=1 // pred_fallthru
      _
    // Predicated region
    $region10: #{tpu_custom_call.1} parent=1 // pred_check
      _
    $region11: #{tpu_custom_call.1} parent=1 // pred_check_branch
      %26 = sbr.rel (0) target = $region13
    $region12: #{tpu_custom_call.1} parent=1 // pred_region
      _
    $region13: #{tpu_custom_call.1} parent=1 // pred_fallthru
      _
    // Predicated region
    $region14: #{tpu_custom_call.1} parent=1 // pred_check
      _
    $region15: #{tpu_custom_call.1} parent=1 // pred_check_branch
      %28 = sbr.rel (0) target = $region17
    $region16: #{tpu_custom_call.1} parent=1 // pred_region
      _
    $region17: #{tpu_custom_call.1} parent=1 // pred_fallthru
      _
    // Predicated region
    $region18: #{tpu_custom_call.1} parent=1 // pred_check
      _
    $region19: #{tpu_custom_call.1} parent=1 // pred_check_branch
      %30 = sbr.rel (0) target = $region21
    $region20: #{tpu_custom_call.1} parent=1 // pred_region
      _
    $region21: #{tpu_custom_call.1} parent=1 // pred_fallthru
      _
    // Predicated region
    $region22: #{tpu_custom_call.1} parent=1 // pred_check
      _
    $region23: #{tpu_custom_call.1} parent=1 // pred_check_branch
      %32 = sbr.rel (0) target = $region25
    $region24: #{tpu_custom_call.1} parent=1 // pred_region
      _
    $region25: #{tpu_custom_call.1} parent=1 // pred_fallthru
      _
    // Predicated region
    $region26: #{tpu_custom_call.1} parent=1 // pred_check
      _
    $region27: #{tpu_custom_call.1} parent=1 // pred_check_branch
      %34 = sbr.rel (0) target = $region29
    $region28: #{tpu_custom_call.1} parent=1 // pred_region
      _
    $region29: #{tpu_custom_call.1} parent=1 // pred_fallthru
      _
    // Predicated region
    $region30: #{tpu_custom_call.1} parent=1 // pred_check
      _
    $region31: #{tpu_custom_call.1} parent=1 // pred_check_branch
      %36 = sbr.rel (0) target = $region33
    $region32: #{tpu_custom_call.1} parent=1 // pred_region
      _
    $region33: #{tpu_custom_call.1} parent=1 // pred_fallthru
      _
    // Predicated region
    $region34: #{tpu_custom_call.1} parent=1 // pred_check
      _
    $region35: #{tpu_custom_call.1} parent=1 // pred_check_branch
      %38 = sbr.rel (0) target = $region37
    $region36: #{tpu_custom_call.1} parent=1 // pred_region
      _
    $region37: #{tpu_custom_call.1} parent=1 // pred_fallthru
      _
    // Predicated region
    $region38: #{tpu_custom_call.1} parent=1 // pred_check
      _
    $region39: #{tpu_custom_call.1} parent=1 // pred_check_branch
      %40 = sbr.rel (0) target = $region41
    $region40: #{tpu_custom_call.1} parent=1 // pred_region
      _
    $region41: #{tpu_custom_call.1} parent=1 // pred_fallthru
      _
    // Predicated region
    $region42: #{tpu_custom_call.1} parent=1 // pred_check
      _
    $region43: #{tpu_custom_call.1} parent=1 // pred_check_branch
      %42 = sbr.rel (0) target = $region45
    $region44: #{tpu_custom_call.1} parent=1 // pred_region
      _
    $region45: #{tpu_custom_call.1} parent=1 // pred_fallthru
      _
    %v44 = vld [vmem:[%s0] sm:$0xff]
    %v45 = vld [vmem:[%s0 + $0x8] sm:$0xff]
    %v46 = vld [vmem:[%s0 + $0x10] sm:$0xff]
    %v47 = vld [vmem:[%s1] sm:$0xf]
    %v48 = vld [vmem:[%s1 + $0x4] sm:$0xf]
    %v49 = vld [vmem:[%s1 + $0x8] sm:$0xf]
    %v50 = vld [vmem:[%s1 + $0xc] sm:$0xf]
    %v51 = vld [vmem:[%s1 + $0x10] sm:$0xf]
    %v52 = vld [vmem:[%s1 + $0x14] sm:$0xf]
    %v53 = vld [vmem:[%s1 + $0x18] sm:$0xf]
    %v54 = vld [vmem:[%s1 + $0x1c] sm:$0xf]
    %v55 = vld [vmem:[%s1 + $0x20] sm:$0xf]
    %v56 = vld [vmem:[%s1 + $0x24] sm:$0xf]
    %v57 = vld [vmem:[%s1 + $0x28] sm:$0xf]
    %v58 = vld [vmem:[%s1 + $0x2c] sm:$0xf]
    %v59 = vld [vmem:[%s1 + $0x30] sm:$0xf]
    %v60 = vld [vmem:[%s1 + $0x34] sm:$0xf]
    %v61 = vld [vmem:[%s1 + $0x38] sm:$0xf]
    %v62 = vld [vmem:[%s1 + $0x3c] sm:$0xf]
    %v63 = vld [vmem:[%s1 + $0x40] sm:$0xf]
    %v64 = vld [vmem:[%s1 + $0x44] sm:$0xf]
    %v65 = vld [vmem:[%s1 + $0x48] sm:$0xf]
    %v66 = vld [vmem:[%s1 + $0x4c] sm:$0xf]
    %v67 = vld [vmem:[%s1 + $0x50] sm:$0xf]
    %v68 = vld [vmem:[%s1 + $0x54] sm:$0xf]
    %v69 = vld [vmem:[%s1 + $0x58] sm:$0xf]
    %v70 = vld [vmem:[%s1 + $0x5c] sm:$0xf]
    %v71 = vld [vmem:[%s2] sm:$0x1]
    %v73 = vperm.slane %v71, 0
    %v78 = vunpack.c.l.b16 %v44
    %v79 = vunpack.c.h.b16 %v44
    %v80 = vunpack.c.l.b16 %v45
    %v81 = vunpack.c.h.b16 %v45
    %v82 = vunpack.c.l.b16 %v46
    %v83 = vunpack.c.h.b16 %v46
    %v84 = vpack.c.b16 %v80, %v78
    %v85 = vpack.c.b16 %v81, %v79
    %v86 = vpack.c.b16 %v82, %v82
    %v87 = vpack.c.b16 %v83, %v83
    %v114 = vunpack.c.l.b16 %v47
    %v115 = vunpack.c.l.b16 %v48
    %v116 = vunpack.c.l.b16 %v49
    %v117 = vunpack.c.l.b16 %v50
    %v118 = vunpack.c.l.b16 %v51
    %v119 = vunpack.c.l.b16 %v52
    %v120 = vunpack.c.l.b16 %v53
    %v121 = vunpack.c.l.b16 %v54
    %v122 = vunpack.c.l.b16 %v55
    %v123 = vunpack.c.l.b16 %v56
    %v124 = vunpack.c.l.b16 %v57
    %v125 = vunpack.c.l.b16 %v58
    %v126 = vunpack.c.l.b16 %v59
    %v127 = vunpack.c.l.b16 %v60
    %v128 = vunpack.c.l.b16 %v61
    %v129 = vunpack.c.l.b16 %v62
    %v130 = vunpack.c.l.b16 %v63
    %v131 = vunpack.c.l.b16 %v64
    %v132 = vunpack.c.l.b16 %v65
    %v133 = vunpack.c.l.b16 %v66
    %v134 = vunpack.c.l.b16 %v67
    %v135 = vunpack.c.l.b16 %v68
    %v136 = vunpack.c.l.b16 %v69
    %v137 = vunpack.c.l.b16 %v70
    %v138 = vpack.c.b16 %v115, %v114
    %v139 = vpack.c.b16 %v117, %v116
    %v140 = vpack.c.b16 %v119, %v118
    %v141 = vpack.c.b16 %v121, %v120
    %v142 = vpack.c.b16 %v123, %v122
    %v143 = vpack.c.b16 %v125, %v124
    %v144 = vpack.c.b16 %v127, %v126
    %v145 = vpack.c.b16 %v129, %v128
    %v146 = vpack.c.b16 %v131, %v130
    %v147 = vpack.c.b16 %v133, %v132
    %v148 = vpack.c.b16 %v135, %v134
    %v149 = vpack.c.b16 %v137, %v136
    %vm162 = vcmask 523264
    %v164 = vsel %vm162, %v85, 0
    %v167 = vsel %vm162, %v87, 0
    %169 = vmatpush.bf16.msra.mxu0 %v145
    %170 = vmatpush.bf16.msra.mxu0 %v144
    %171 = vmatpush.bf16.msra.mxu0 %v143
    %172 = vmatpush.bf16.msra.mxu0 %v142
    %173 = vmatpush.bf16.msra.mxu0 %v141
    %174 = vmatpush.bf16.msra.mxu0 %v140
    %175 = vmatpush.bf16.msra.mxu0 %v139
    %176 = vmatpush.bf16.msra.mxu0 %v138
    %177 = vmatmul.bf16.gmra.mxu0 %v84
    %v178 = vpop.f32.mrf.mxu0
    %v179 = vadd.f32 %v73, %v178
    %v180 = vpop.f32.mrf.mxu0
    %v181 = vadd.f32 %v73, %v180
    %182 = vmatmul.bf16.gmra.mxu0 %v86
    %v183 = vpop.f32.mrf.mxu0
    %v184 = vadd.f32 %v73, %v183
    %v185 = vpop.f32.mrf.mxu0
    %186 = vdwg.mxu0
    %187 = vmatpush.bf16.msra.mxu0 0
    %188 = vmatpush.bf16.msra.mxu0 0
    %189 = vmatpush.bf16.msra.mxu0 0
    %190 = vmatpush.bf16.msra.mxu0 0
    %191 = vmatpush.bf16.msra.mxu0 %v149
    %192 = vmatpush.bf16.msra.mxu0 %v148
    %193 = vmatpush.bf16.msra.mxu0 %v147
    %194 = vmatpush.bf16.msra.mxu0 %v146
    %195 = vmatmul.bf16.gmra.mxu0 %v164
    %v196 = vpop.f32.mrf.mxu0
    %v197 = vadd.f32 %v179, %v196
    %v198 = vpop.f32.mrf.mxu0
    %v199 = vadd.f32 %v181, %v198
    %200 = vmatmul.bf16.gmra.mxu0 %v167
    %v201 = vpop.f32.mrf.mxu0
    %v202 = vadd.f32 %v184, %v201
    %v203 = vpop.f32.mrf.mxu0
    %204 = vdwg.mxu0
    %v205 = vmax.f32 %v197, 0.0
    %v206 = vmax.f32 %v199, 0.0
    %v207 = vmax.f32 %v202, 0.0
    %v208 = vpack.c.bf16 %v206, %v205
    %v209 = vpack.c.bf16 %v207, %v207
    %v210 = vld [vmem:[%s3] sm:$0xf]
    %v211 = vld [vmem:[%s3 + $0x4] sm:$0xf]
    %v212 = vld [vmem:[%s3 + $0x8] sm:$0xf]
    %v213 = vld [vmem:[%s3 + $0xc] sm:$0xf]
    %v214 = vld [vmem:[%s4] sm:$0x1]
    %v216 = vperm.slane %v214, 0
    %v222 = vunpack.c.l.b16 %v210
    %v223 = vunpack.c.l.b16 %v211
    %v224 = vunpack.c.l.b16 %v212
    %v225 = vunpack.c.l.b16 %v213
    %v226 = vpack.c.b16 %v223, %v222
    %v227 = vpack.c.b16 %v225, %v224
    %vm230 = vcmask 261120
    %v232 = vsel %vm230, %v208, 0
    %v235 = vsel %vm230, %v209, 0
    %237 = vmatpush.bf16.msra.mxu0 0
    %238 = vmatpush.bf16.msra.mxu0 0
    %239 = vmatpush.bf16.msra.mxu0 0
    %240 = vmatpush.bf16.msra.mxu0 0
    %241 = vmatpush.bf16.msra.mxu0 0
    %242 = vmatpush.bf16.msra.mxu0 0
    %243 = vmatpush.bf16.msra.mxu0 %v227
    %244 = vmatpush.bf16.msra.mxu0 %v226
    %245 = vmatmul.bf16.gmra.mxu0 %v232
    %v246 = vpop.f32.mrf.mxu0
    %v247 = vadd.f32 %v216, %v246
    %v248 = vpop.f32.mrf.mxu0
    %v249 = vadd.f32 %v216, %v248
    %250 = vmatmul.bf16.gmra.mxu0 %v235
    %v251 = vpop.f32.mrf.mxu0
    %v252 = vadd.f32 %v216, %v251
    %v253 = vpop.f32.mrf.mxu0
    %254 = vdwg.mxu0
    %v255 = vmax.f32 %v247, 0.0
    %v256 = vmax.f32 %v249, 0.0
    %v257 = vmax.f32 %v252, 0.0
    %v258 = vpack.c.bf16 %v256, %v255
    %v259 = vpack.c.bf16 %v257, %v257
    %v260 = vld [vmem:[%s5] sm:$0xf]
    %v261 = vld [vmem:[%s5 + $0x4] sm:$0xf]
    %v262 = vld [vmem:[%s5 + $0x8] sm:$0xf]
    %v263 = vld [vmem:[%s5 + $0xc] sm:$0xf]
    %v264 = vld [vmem:[%s6] sm:$0x1]
    %v266 = vperm.slane %v264, 0
    %270 = vrot.lane.b32.xlu0 %v258, 112
    %v271 = vpop.permute.xlu0 %270
    %272 = vrot.lane.b32.xlu0 %v259, 112
    %v273 = vpop.permute.xlu0 %272
    %v278 = vunpack.c.l.b16 %v260
    %v279 = vunpack.c.l.b16 %v261
    %v280 = vunpack.c.l.b16 %v262
    %v281 = vunpack.c.l.b16 %v263
    %v282 = vpack.c.b16 %v279, %v278
    %v283 = vpack.c.b16 %v281, %v280
    %v287 = vsel %vm230, %v271, 0
    %v290 = vsel %vm230, %v273, 0
    %292 = vmatpush.bf16.msra.mxu0 0
    %293 = vmatpush.bf16.msra.mxu0 0
    %294 = vmatpush.bf16.msra.mxu0 0
    %295 = vmatpush.bf16.msra.mxu0 0
    %296 = vmatpush.bf16.msra.mxu0 0
    %297 = vmatpush.bf16.msra.mxu0 0
    %298 = vmatpush.bf16.msra.mxu0 %v283
    %299 = vmatpush.bf16.msra.mxu0 %v282
    %300 = vmatmul.bf16.gmra.mxu0 %v287
    %v301 = vpop.f32.mrf.mxu0
    %v302 = vadd.f32 %v266, %v301
    %v303 = vpop.f32.mrf.mxu0
    %v304 = vadd.f32 %v266, %v303
    %305 = vmatmul.bf16.gmra.mxu0 %v290
    %v306 = vpop.f32.mrf.mxu0
    %v307 = vadd.f32 %v266, %v306
    %v308 = vpop.f32.mrf.mxu0
    %309 = vdwg.mxu0
    %v310 = vmul.f32 %v302, %v302
    %v311 = vmul.f32 %v304, %v304
    %v312 = vmul.f32 %v307, %v307
    %313 = vadd.xlane.f32.xlu0 %v310
    %v314 = vpop.xlane.xlu0 %313
    %315 = vadd.xlane.f32.xlu0 %v311
    %v316 = vpop.xlane.xlu0 %315
    %317 = vadd.xlane.f32.xlu0 %v312
    %v318 = vpop.xlane.xlu0 %317
    %v319 = vmax.f32 %v314, 1e-24
    %v320 = vmax.f32 %v316, 1e-24
    %v321 = vmax.f32 %v318, 1e-24
    %v322 = vrsqrt.pop %v319
    %v323 = vmul.f32 %v322, %v319
    %v324 = vmul.f32 %v323, %v322
    %v325 = vmul.f32 0.5, %v324
    %v326 = vsub.f32 1.5, %v325
    %v327 = vmul.f32 %v322, %v326
    %vm328 = vweird.f32 %v319
    %vm329 = vweird.f32 %v322
    %vm330 = vmor %vm328, %vm329
    %v331 = vsel %vm330, %v322, %v327
    %v332 = vrsqrt.pop %v320
    %v333 = vmul.f32 %v332, %v320
    %v334 = vmul.f32 %v333, %v332
    %v335 = vmul.f32 0.5, %v334
    %v336 = vsub.f32 1.5, %v335
    %v337 = vmul.f32 %v332, %v336
    %vm338 = vweird.f32 %v320
    %vm339 = vweird.f32 %v332
    %vm340 = vmor %vm338, %vm339
    %v341 = vsel %vm340, %v332, %v337
    %v342 = vrsqrt.pop %v321
    %v343 = vmul.f32 %v342, %v321
    %v344 = vmul.f32 %v343, %v342
    %v345 = vmul.f32 0.5, %v344
    %v346 = vsub.f32 1.5, %v345
    %v347 = vmul.f32 %v342, %v346
    %vm348 = vweird.f32 %v321
    %vm349 = vweird.f32 %v342
    %vm350 = vmor %vm348, %vm349
    %v351 = vsel %vm350, %v342, %v347
    %v352 = vmul.f32 %v302, %v331
    %v353 = vmul.f32 %v304, %v341
    %v354 = vmul.f32 %v307, %v351
    %vm355 = vcmask 130048
    %356 = vst.msk [vmem:[%s11] sm:$0xff] %vm355, %v247
    %357 = vst.msk [vmem:[%s11 + $0x8] sm:$0xff] %vm355, %v249
    %358 = vst.msk [vmem:[%s11 + $0x10] sm:$0xff] %vm355, %v252
    %v359 = vld [vmem:[%s7] sm:$0xff]
    %v360 = vld [vmem:[%s7 + $0x8] sm:$0xff]
    %v361 = vld [vmem:[%s7 + $0x10] sm:$0xff]
    %v362 = vld [vmem:[%s7 + $0x18] sm:$0xff]
    %v363 = vld [vmem:[%s7 + $0x20] sm:$0xff]
    %v364 = vld [vmem:[%s7 + $0x28] sm:$0xff]
    %v365 = vld [vmem:[%s7 + $0x30] sm:$0xff]
    %v366 = vld [vmem:[%s7 + $0x38] sm:$0xff]
    %v367 = vld [vmem:[%s7 + $0x40] sm:$0xff]
    %v368 = vld [vmem:[%s7 + $0x48] sm:$0xff]
    %v369 = vld [vmem:[%s7 + $0x50] sm:$0xff]
    %v370 = vld [vmem:[%s7 + $0x58] sm:$0xff]
    %v371 = vld [vmem:[%s7 + $0x60] sm:$0xff]
    %v372 = vld [vmem:[%s7 + $0x68] sm:$0xff]
    %v373 = vld [vmem:[%s7 + $0x70] sm:$0xff]
    %v374 = vld [vmem:[%s7 + $0x78] sm:$0xff]
    %v375 = vld [vmem:[%s8] sm:$0x3]
    %v376 = vlaneseq
    %v377 = vand.u32 %v376, 127
    %vm378 = vcmp.lt.s32.totalorder %v377, 10
    %v379 = vsel %vm378, %v249, -1e+30
    %v380 = vsel %vm355, %v379, -inf
    %381 = vmax.xlane.f32.xlu0 %v380
    %v382 = vpop.xlane.xlu0 %381
    %v383 = vsub.f32 %v379, %v382
    %v384 = vmul.f32 %v383, 1.442695
    %v385 = vpow.pop %v384
    %v386 = vsel %vm378, %v385, 0.0
    %v387 = vsel %vm355, %v386, 0.0
    %388 = vadd.xlane.f32.xlu0 %v387
    %v389 = vpop.xlane.xlu0 %388
    %v390 = vrcp.pop %v389
    %v391 = vmul.f32 %v389, %v390
    %v392 = vsub.f32 1.0, %v391
    %v393 = vmul.f32 %v390, %v392
    %v394 = vadd.f32 %v390, %v393
    %vm395 = vweird.f32 %v389
    %vm396 = vweird.f32 %v390
    %vm397 = vmor %vm395, %vm396
    %v398 = vsel %vm397, %v390, %v394
    %v399 = vand.u32 2147483647, %v389
    %vm400 = vcmp.eq.f32.partialorder %v399, 8.507059e+37
    %v401 = vand.u32 %v389, 2147483648
    %v402 = vor.u32 1.1754944e-38, %v401
    %v403 = vsel %vm400, %v402, %v398
    %v404 = vmul.f32 %v386, %v403
    %v405 = vpack.c.bf16 %v354, %v353
    %v422 = vunpack.c.l.b16 %v359
    %v423 = vunpack.c.h.b16 %v359
    %v424 = vunpack.c.l.b16 %v360
    %v425 = vunpack.c.h.b16 %v360
    %v426 = vunpack.c.l.b16 %v361
    %v427 = vunpack.c.h.b16 %v361
    %v428 = vunpack.c.l.b16 %v362
    %v429 = vunpack.c.h.b16 %v362
    %v430 = vunpack.c.l.b16 %v363
    %v431 = vunpack.c.h.b16 %v363
    %v432 = vunpack.c.l.b16 %v364
    %v433 = vunpack.c.h.b16 %v364
    %v434 = vunpack.c.l.b16 %v365
    %v435 = vunpack.c.h.b16 %v365
    %v436 = vunpack.c.l.b16 %v366
    %v437 = vunpack.c.h.b16 %v366
    %v438 = vunpack.c.l.b16 %v367
    %v439 = vunpack.c.h.b16 %v367
    %v440 = vunpack.c.l.b16 %v368
    %v441 = vunpack.c.h.b16 %v368
    %v442 = vunpack.c.l.b16 %v369
    %v443 = vunpack.c.h.b16 %v369
    %v444 = vunpack.c.l.b16 %v370
    %v445 = vunpack.c.h.b16 %v370
    %v446 = vunpack.c.l.b16 %v371
    %v447 = vunpack.c.h.b16 %v371
    %v448 = vunpack.c.l.b16 %v372
    %v449 = vunpack.c.h.b16 %v372
    %v450 = vunpack.c.l.b16 %v373
    %v451 = vunpack.c.h.b16 %v373
    %v452 = vunpack.c.l.b16 %v374
    %v453 = vunpack.c.h.b16 %v374
    %v454 = vpack.c.b16 %v424, %v422
    %v455 = vpack.c.b16 %v425, %v423
    %v456 = vpack.c.b16 %v428, %v426
    %v457 = vpack.c.b16 %v429, %v427
    %v458 = vpack.c.b16 %v432, %v430
    %v459 = vpack.c.b16 %v433, %v431
    %v460 = vpack.c.b16 %v436, %v434
    %v461 = vpack.c.b16 %v437, %v435
    %v462 = vpack.c.b16 %v440, %v438
    %v463 = vpack.c.b16 %v441, %v439
    %v464 = vpack.c.b16 %v444, %v442
    %v465 = vpack.c.b16 %v445, %v443
    %v466 = vpack.c.b16 %v448, %v446
    %v467 = vpack.c.b16 %v449, %v447
    %v468 = vpack.c.b16 %v452, %v450
    %v469 = vpack.c.b16 %v453, %v451
    %486 = vmatpush.bf16.msra.mxu0 %v468
    %487 = vmatpush.bf16.msra.mxu0 %v466
    %488 = vmatpush.bf16.msra.mxu0 %v464
    %489 = vmatpush.bf16.msra.mxu0 %v462
    %490 = vmatpush.bf16.msra.mxu0 %v460
    %491 = vmatpush.bf16.msra.mxu0 %v458
    %492 = vmatpush.bf16.msra.mxu0 %v456
    %493 = vmatpush.bf16.msra.mxu0 %v454
    %494 = vmatmul.bf16.gmra.mxu0 %v405
    %v495 = vpop.f32.mrf.mxu0
    %v496 = vadd.f32 0.0, %v495
    %v497 = vpop.f32.mrf.mxu0
    %v498 = vadd.f32 0.0, %v497
    %499 = vdwg.mxu0
    %500 = vmatpush.bf16.msra.mxu0 %v469
    %501 = vmatpush.bf16.msra.mxu0 %v467
    %502 = vmatpush.bf16.msra.mxu0 %v465
    %503 = vmatpush.bf16.msra.mxu0 %v463
    %504 = vmatpush.bf16.msra.mxu0 %v461
    %505 = vmatpush.bf16.msra.mxu0 %v459
    %506 = vmatpush.bf16.msra.mxu0 %v457
    %507 = vmatpush.bf16.msra.mxu0 %v455
    %508 = vmatmul.bf16.gmra.mxu0 %v405
    %v509 = vpop.f32.mrf.mxu0
    %v510 = vadd.f32 0.0, %v509
    %v511 = vpop.f32.mrf.mxu0
    %v512 = vadd.f32 0.0, %v511
    %513 = vdwg.mxu0
    %v514 = vmul.f32 %v496, 10.0
    %v515 = vmul.f32 %v510, 10.0
    %v516 = vmul.f32 %v498, 10.0
    %v517 = vmul.f32 %v512, 10.0
    %v518 = vmax.f32 %v514, %v515
    %519 = vmax.xlane.f32.xlu0 %v518
    %v520 = vpop.xlane.xlu0 %519
    %v521 = vsub.f32 %v514, %v520
    %v522 = vsub.f32 %v515, %v520
    %v523 = vmul.f32 %v521, 1.442695
    %v524 = vpow.pop %v523
    %v525 = vmul.f32 %v522, 1.442695
    %v526 = vpow.pop %v525
    %v527 = vadd.f32 %v524, %v526
    %528 = vadd.xlane.f32.xlu0 %v527
    %v529 = vpop.xlane.xlu0 %528
    %v530 = vrcp.pop %v529
    %v531 = vmul.f32 %v524, %v530
    %v532 = vmul.f32 %v526, %v530
    %v533 = vlaneseq
    %v534 = vshrl.u32 %v533, 7
    %v535 = vadd.s32 %v534, 8
    %v536 = vperm.slane %v375, 0
    %v537 = vperm.slane %v375, 1
    %vm538 = vcmp.eq.s32.totalorder %v536, %v534
    %vm539 = vcmp.eq.s32.totalorder %v537, %v534
    %vm540 = vcmp.eq.s32.totalorder %v536, %v535
    %vm541 = vcmp.eq.s32.totalorder %v537, %v535
    %v542 = vsel %vm538, 1, 0
    %v543 = vsel %vm539, 1, 0
    %v544 = vsel %vm540, 1, 0
    %v545 = vsel %vm541, 1, 0
    %v546 = vcvt.s32.f32 %v542
    %v547 = vcvt.s32.f32 %v543
    %v548 = vcvt.s32.f32 %v544
    %v549 = vcvt.s32.f32 %v545
    %v550 = vpack.c.bf16 %v548, %v546
    %v551 = vpack.c.bf16 %v549, %v547
    %v552 = vpack.c.bf16 %v404, %v404
    %v554 = vsel %vm355, %v552, 0
    %556 = vmatpush.bf16.msra.mxu0 0
    %557 = vmatpush.bf16.msra.mxu0 0
    %558 = vmatpush.bf16.msra.mxu0 0
    %559 = vmatpush.bf16.msra.mxu0 0
    %560 = vmatpush.bf16.msra.mxu0 0
    %561 = vmatpush.bf16.msra.mxu0 0
    %562 = vmatpush.bf16.msra.mxu0 0
    %563 = vmatpush.bf16.msra.mxu0 %v550
    %564 = vmatmul.bf16.gmra.mxu0 %v554
    %v565 = vpop.f32.mrf.mxu0
    %v566 = vadd.f32 0.0, %v565
    %v567 = vpop.f32.mrf.mxu0
    %568 = vdwg.mxu0
    %569 = vmatpush.bf16.msra.mxu0 0
    %570 = vmatpush.bf16.msra.mxu0 0
    %571 = vmatpush.bf16.msra.mxu0 0
    %572 = vmatpush.bf16.msra.mxu0 0
    %573 = vmatpush.bf16.msra.mxu0 0
    %574 = vmatpush.bf16.msra.mxu0 0
    %575 = vmatpush.bf16.msra.mxu0 0
    %576 = vmatpush.bf16.msra.mxu0 %v551
    %577 = vmatmul.bf16.gmra.mxu0 %v554
    %v578 = vpop.f32.mrf.mxu0
    %v579 = vadd.f32 0.0, %v578
    %v580 = vpop.f32.mrf.mxu0
    %581 = vdwg.mxu0
    %v582 = vmul.f32 %v531, %v566
    %v583 = vmul.f32 %v532, %v579
    %v584 = vadd.f32 %v582, %v583
    %585 = vadd.xlane.f32.xlu0 %v584
    %v586 = vpop.xlane.xlu0 %585
    %v587 = vmax.f32 %v586, 1e-30
    %v588 = vrcp.pop %v587
    %v589 = vmul.f32 %v582, %v588
    %v590 = vmul.f32 %v583, %v588
    %v591 = vmax.f32 %v516, %v517
    %592 = vmax.xlane.f32.xlu0 %v591
    %v593 = vpop.xlane.xlu0 %592
    %v594 = vsub.f32 %v516, %v593
    %v595 = vsub.f32 %v517, %v593
    %v596 = vmul.f32 %v594, 1.442695
    %v597 = vpow.pop %v596
    %v598 = vmul.f32 %v595, 1.442695
    %v599 = vpow.pop %v598
    %v600 = vadd.f32 %v597, %v599
    %601 = vadd.xlane.f32.xlu0 %v600
    %v602 = vpop.xlane.xlu0 %601
    %v603 = vlog2.pop %v602
    %v604 = vmul.f32 %v603, 0.6931472
    %v605 = vsub.f32 %v594, %v604
    %v606 = vsub.f32 %v595, %v604
    %v607 = vsub.f32 0.0, %v589
    %v608 = vsub.f32 0.0, %v590
    %v609 = vmul.f32 %v607, %v605
    %v610 = vmul.f32 %v608, %v606
    %v611 = vadd.f32 %v609, %v610
    %612 = vadd.xlane.f32.xlu0 %v611
    %v613 = vpop.xlane.xlu0 %612
    %v614 = vpack.c.bf16 %v531, %v531
    %v615 = vpack.c.bf16 %v532, %v532
    %616 = vmatpush.bf16.xpose.msra.mxu0 0
    %617 = vmatpush.bf16.xpose.msra.mxu0 0
    %618 = vmatpush.bf16.xpose.msra.mxu0 0
    %619 = vmatpush.bf16.xpose.msra.mxu0 0
    %620 = vmatpush.bf16.xpose.msra.mxu0 0
    %621 = vmatpush.bf16.xpose.msra.mxu0 0
    %622 = vmatpush.bf16.xpose.msra.mxu0 0
    %623 = vmatpush.bf16.xpose.msra.mxu0 %v550
    %624 = vmatmul.bf16.gmra.mxu0 %v614
    %v625 = vpop.f32.mrf.mxu0
    %v626 = vadd.f32 0.0, %v625
    %v627 = vpop.f32.mrf.mxu0
    %628 = vdwg.mxu0
    %629 = vmatpush.bf16.xpose.msra.mxu0 0
    %630 = vmatpush.bf16.xpose.msra.mxu0 0
    %631 = vmatpush.bf16.xpose.msra.mxu0 0
    %632 = vmatpush.bf16.xpose.msra.mxu0 0
    %633 = vmatpush.bf16.xpose.msra.mxu0 0
    %634 = vmatpush.bf16.xpose.msra.mxu0 0
    %635 = vmatpush.bf16.xpose.msra.mxu0 0
    %636 = vmatpush.bf16.xpose.msra.mxu0 %v551
    %637 = vmatmul.bf16.gmra.mxu0 %v615
    %v638 = vpop.f32.mrf.mxu0
    %v639 = vadd.f32 %v626, %v638
    %v640 = vpop.f32.mrf.mxu0
    %641 = vdwg.mxu0
    %v642 = vmul.f32 %v404, 0.9
    %v643 = vmul.f32 %v639, 0.1
    %v644 = vadd.f32 %v642, %v643
    %vm645 = vcmp.eq.s32.totalorder %v377, 10
    %v646 = vsel %vm645, %v613, %v644
    %647 = vst.msk [vmem:[#allocation2] sm:$0xff] %vm355, %v646
    %v648 = vld [vmem:[%s9] sm:$0xff]
    %v649 = vadd.s32 %v377, 128
    %650 = vset.pattern.permute.xlu0 0
    %651 = vperm.xlu0 %650, %v648
    %v652 = vpop.permute.xlu0 %651
    %vm653 = vcmp.eq.s32.totalorder %v652, %v377
    %vm654 = vcmp.eq.s32.totalorder %v652, %v649
    %v655 = vsel %vm653, 1, 0
    %v656 = vsel %vm654, 1, 0
    %v657 = vcvt.s32.f32 %v655
    %v658 = vcvt.s32.f32 %v656
    %v659 = vpack.c.bf16 %v657, %v657
    %v660 = vpack.c.bf16 %v658, %v658
    %661 = vmatpush.bf16.xpose.msra.mxu0 %v468
    %662 = vmatpush.bf16.xpose.msra.mxu0 %v466
    %663 = vmatpush.bf16.xpose.msra.mxu0 %v464
    %664 = vmatpush.bf16.xpose.msra.mxu0 %v462
    %665 = vmatpush.bf16.xpose.msra.mxu0 %v460
    %666 = vmatpush.bf16.xpose.msra.mxu0 %v458
    %667 = vmatpush.bf16.xpose.msra.mxu0 %v456
    %668 = vmatpush.bf16.xpose.msra.mxu0 %v454
    %669 = vmatmul.bf16.gmra.mxu0 %v659
    %v670 = vpop.f32.mrf.mxu0
    %v671 = vadd.f32 0.0, %v670
    %v672 = vpop.f32.mrf.mxu0
    %673 = vdwg.mxu0
    %674 = vmatpush.bf16.xpose.msra.mxu0 %v469
    %675 = vmatpush.bf16.xpose.msra.mxu0 %v467
    %676 = vmatpush.bf16.xpose.msra.mxu0 %v465
    %677 = vmatpush.bf16.xpose.msra.mxu0 %v463
    %678 = vmatpush.bf16.xpose.msra.mxu0 %v461
    %679 = vmatpush.bf16.xpose.msra.mxu0 %v459
    %680 = vmatpush.bf16.xpose.msra.mxu0 %v457
    %681 = vmatpush.bf16.xpose.msra.mxu0 %v455
    %682 = vmatmul.bf16.gmra.mxu0 %v660
    %v683 = vpop.f32.mrf.mxu0
    %v684 = vadd.f32 %v671, %v683
    %v685 = vpop.f32.mrf.mxu0
    %686 = vdwg.mxu0
    %vm687 = vcmp.lt.s32.totalorder %v648, 256
    %v688 = vsel %vm687, 1, 0
    %v689 = vcvt.s32.f32 %v688
    %v690 = vmul.f32 %v684, 0.99
    %v691 = vmul.f32 %v352, 0.01
    %v692 = vadd.f32 %v690, %v691
    %694 = vset.pattern.permute.xlu0 0
    %695 = vperm.xlu0 %694, %v689
    %v696 = vpop.permute.xlu0 %695
    %v698 = vmul.f32 %v692, %v696
    %v699 = vmul.f32 %v698, %v698
    %v700 = vrot.slane %v699, 4
    %v701 = vadd.f32 %v699, %v700
    %v702 = vrot.slane %v701, 2
    %v703 = vadd.f32 %v701, %v702
    %v704 = vrot.slane %v703, 1
    %v705 = vadd.f32 %v703, %v704
    %v706 = vmax.f32 %v705, 1e-24
    %v707 = vrsqrt.pop %v706
    %v708 = vmul.f32 %v707, %v706
    %v709 = vmul.f32 %v708, %v707
    %v710 = vmul.f32 0.5, %v709
    %v711 = vsub.f32 1.5, %v710
    %v712 = vmul.f32 %v707, %v711
    %vm713 = vweird.f32 %v706
    %vm714 = vweird.f32 %v707
    %vm715 = vmor %vm713, %vm714
    %v716 = vsel %vm715, %v707, %v712
    %v717 = vmul.f32 %v698, %v716
    %v718 = vrot.slane %v657, 4
    %v719 = vadd.f32 %v657, %v718
    %v720 = vrot.slane %v719, 2
    %v721 = vadd.f32 %v719, %v720
    %v722 = vrot.slane %v721, 1
    %v723 = vadd.f32 %v721, %v722
    %v724 = vrot.slane %v658, 4
    %v725 = vadd.f32 %v658, %v724
    %v726 = vrot.slane %v725, 2
    %v727 = vadd.f32 %v725, %v726
    %v728 = vrot.slane %v727, 1
    %v729 = vadd.f32 %v727, %v728
    %v730 = vpack.c.bf16 %v717, %v717
    %731 = vxpose.xlu0.c.b16.start [1/8] %v730, 128
    %732 = vxpose.xlu0.c.b16.cont [2/8] 0, 128
    %733 = vxpose.xlu0.c.b16.cont [3/8] 0, 128
    %734 = vxpose.xlu0.c.b16.cont [4/8] 0, 128
    %735 = vxpose.xlu0.c.b16.cont [5/8] 0, 128
    %736 = vxpose.xlu0.c.b16.cont [6/8] 0, 128
    %737 = vxpose.xlu0.c.b16.cont [7/8] 0, 128
    %738 = vxpose.xlu0.c.b16.end [8/8] 0, 128
    %v739 = vpop.trf.xlu0
    %v740 = vpop.trf.xlu0
    %v741 = vpop.trf.xlu0
    %v742 = vpop.trf.xlu0
    %v743 = vpop.trf.xlu0
    %v744 = vpop.trf.xlu0
    %v745 = vpop.trf.xlu0
    %v746 = vpop.trf.xlu0
    %vm747 = vcmask 64512
    %v749 = vsel %vm747, %v739, 0
    %v752 = vsel %vm747, %v740, 0
    %v755 = vsel %vm747, %v741, 0
    %v758 = vsel %vm747, %v742, 0
    %v761 = vsel %vm747, %v743, 0
    %v764 = vsel %vm747, %v744, 0
    %v767 = vsel %vm747, %v745, 0
    %v770 = vsel %vm747, %v746, 0
    %vm772 = vcmask 1043456
    %v774 = vsel %vm772, %v659, 0
    %v777 = vsel %vm772, %v660, 0
    %779 = vmatpush.bf16.msra.mxu0 0
    %780 = vmatpush.bf16.msra.mxu0 0
    %781 = vmatpush.bf16.msra.mxu0 0
    %782 = vmatpush.bf16.msra.mxu0 0
    %783 = vmatpush.bf16.msra.mxu0 0
    %784 = vmatpush.bf16.msra.mxu0 0
    %785 = vmatpush.bf16.msra.mxu0 0
    %786 = vmatpush.bf16.msra.mxu0 %v774
    %787 = vmatmul.bf16.gmra.mxu0 %v749
    %v788 = vpop.f32.mrf.mxu0
    %v789 = vadd.f32 0.0, %v788
    %v790 = vpop.f32.mrf.mxu0
    %v791 = vadd.f32 0.0, %v790
    %792 = vmatmul.bf16.gmra.mxu0 %v752
    %v793 = vpop.f32.mrf.mxu0
    %v794 = vadd.f32 0.0, %v793
    %v795 = vpop.f32.mrf.mxu0
    %v796 = vadd.f32 0.0, %v795
    %797 = vmatmul.bf16.gmra.mxu0 %v755
    %v798 = vpop.f32.mrf.mxu0
    %v799 = vadd.f32 0.0, %v798
    %v800 = vpop.f32.mrf.mxu0
    %v801 = vadd.f32 0.0, %v800
    %802 = vmatmul.bf16.gmra.mxu0 %v758
    %v803 = vpop.f32.mrf.mxu0
    %v804 = vadd.f32 0.0, %v803
    %v805 = vpop.f32.mrf.mxu0
    %v806 = vadd.f32 0.0, %v805
    %807 = vmatmul.bf16.gmra.mxu0 %v761
    %v808 = vpop.f32.mrf.mxu0
    %v809 = vadd.f32 0.0, %v808
    %v810 = vpop.f32.mrf.mxu0
    %v811 = vadd.f32 0.0, %v810
    %812 = vmatmul.bf16.gmra.mxu0 %v764
    %v813 = vpop.f32.mrf.mxu0
    %v814 = vadd.f32 0.0, %v813
    %v815 = vpop.f32.mrf.mxu0
    %v816 = vadd.f32 0.0, %v815
    %817 = vmatmul.bf16.gmra.mxu0 %v767
    %v818 = vpop.f32.mrf.mxu0
    %v819 = vadd.f32 0.0, %v818
    %v820 = vpop.f32.mrf.mxu0
    %v821 = vadd.f32 0.0, %v820
    %822 = vmatmul.bf16.gmra.mxu0 %v770
    %v823 = vpop.f32.mrf.mxu0
    %v824 = vadd.f32 0.0, %v823
    %v825 = vpop.f32.mrf.mxu0
    %v826 = vadd.f32 0.0, %v825
    %827 = vdwg.mxu0
    %828 = vmatpush.bf16.msra.mxu0 0
    %829 = vmatpush.bf16.msra.mxu0 0
    %830 = vmatpush.bf16.msra.mxu0 0
    %831 = vmatpush.bf16.msra.mxu0 0
    %832 = vmatpush.bf16.msra.mxu0 0
    %833 = vmatpush.bf16.msra.mxu0 0
    %834 = vmatpush.bf16.msra.mxu0 0
    %835 = vmatpush.bf16.msra.mxu0 %v777
    %836 = vmatmul.bf16.gmra.mxu0 %v749
    %v837 = vpop.f32.mrf.mxu0
    %v838 = vadd.f32 0.0, %v837
    %v839 = vpop.f32.mrf.mxu0
    %v840 = vadd.f32 0.0, %v839
    %841 = vmatmul.bf16.gmra.mxu0 %v752
    %v842 = vpop.f32.mrf.mxu0
    %v843 = vadd.f32 0.0, %v842
    %v844 = vpop.f32.mrf.mxu0
    %v845 = vadd.f32 0.0, %v844
    %846 = vmatmul.bf16.gmra.mxu0 %v755
    %v847 = vpop.f32.mrf.mxu0
    %v848 = vadd.f32 0.0, %v847
    %v849 = vpop.f32.mrf.mxu0
    %v850 = vadd.f32 0.0, %v849
    %851 = vmatmul.bf16.gmra.mxu0 %v758
    %v852 = vpop.f32.mrf.mxu0
    %v853 = vadd.f32 0.0, %v852
    %v854 = vpop.f32.mrf.mxu0
    %v855 = vadd.f32 0.0, %v854
    %856 = vmatmul.bf16.gmra.mxu0 %v761
    %v857 = vpop.f32.mrf.mxu0
    %v858 = vadd.f32 0.0, %v857
    %v859 = vpop.f32.mrf.mxu0
    %v860 = vadd.f32 0.0, %v859
    %861 = vmatmul.bf16.gmra.mxu0 %v764
    %v862 = vpop.f32.mrf.mxu0
    %v863 = vadd.f32 0.0, %v862
    %v864 = vpop.f32.mrf.mxu0
    %v865 = vadd.f32 0.0, %v864
    %866 = vmatmul.bf16.gmra.mxu0 %v767
    %v867 = vpop.f32.mrf.mxu0
    %v868 = vadd.f32 0.0, %v867
    %v869 = vpop.f32.mrf.mxu0
    %v870 = vadd.f32 0.0, %v869
    %871 = vmatmul.bf16.gmra.mxu0 %v770
    %v872 = vpop.f32.mrf.mxu0
    %v873 = vadd.f32 0.0, %v872
    %v874 = vpop.f32.mrf.mxu0
    %v875 = vadd.f32 0.0, %v874
    %876 = vdwg.mxu0
    %v877 = vunpack.c.l.bf16 %v359
    %v878 = vunpack.c.h.bf16 %v359
    %v879 = vunpack.c.l.bf16 %v360
    %v880 = vunpack.c.h.bf16 %v360
    %v881 = vunpack.c.l.bf16 %v361
    %v882 = vunpack.c.h.bf16 %v361
    %v883 = vunpack.c.l.bf16 %v362
    %v884 = vunpack.c.h.bf16 %v362
    %v885 = vunpack.c.l.bf16 %v363
    %v886 = vunpack.c.h.bf16 %v363
    %v887 = vunpack.c.l.bf16 %v364
    %v888 = vunpack.c.h.bf16 %v364
    %v889 = vunpack.c.l.bf16 %v365
    %v890 = vunpack.c.h.bf16 %v365
    %v891 = vunpack.c.l.bf16 %v366
    %v892 = vunpack.c.h.bf16 %v366
    %v893 = vunpack.c.l.bf16 %v367
    %v894 = vunpack.c.h.bf16 %v367
    %v895 = vunpack.c.l.bf16 %v368
    %v896 = vunpack.c.h.bf16 %v368
    %v897 = vunpack.c.l.bf16 %v369
    %v898 = vunpack.c.h.bf16 %v369
    %v899 = vunpack.c.l.bf16 %v370
    %v900 = vunpack.c.h.bf16 %v370
    %v901 = vunpack.c.l.bf16 %v371
    %v902 = vunpack.c.h.bf16 %v371
    %v903 = vunpack.c.l.bf16 %v372
    %v904 = vunpack.c.h.bf16 %v372
    %v905 = vunpack.c.l.bf16 %v373
    %v906 = vunpack.c.h.bf16 %v373
    %v907 = vunpack.c.l.bf16 %v374
    %v908 = vunpack.c.h.bf16 %v374
    %v909 = vsub.f32 1.0, %v723
    %v910 = vsub.f32 1.0, %v729
    %v911 = vmul.f32 %v877, %v909
    %v912 = vmul.f32 %v878, %v910
    %v913 = vmul.f32 %v879, %v909
    %v914 = vmul.f32 %v880, %v910
    %v915 = vmul.f32 %v881, %v909
    %v916 = vmul.f32 %v882, %v910
    %v917 = vmul.f32 %v883, %v909
    %v918 = vmul.f32 %v884, %v910
    %v919 = vmul.f32 %v885, %v909
    %v920 = vmul.f32 %v886, %v910
    %v921 = vmul.f32 %v887, %v909
    %v922 = vmul.f32 %v888, %v910
    %v923 = vmul.f32 %v889, %v909
    %v924 = vmul.f32 %v890, %v910
    %v925 = vmul.f32 %v891, %v909
    %v926 = vmul.f32 %v892, %v910
    %v927 = vmul.f32 %v893, %v909
    %v928 = vmul.f32 %v894, %v910
    %v929 = vmul.f32 %v895, %v909
    %v930 = vmul.f32 %v896, %v910
    %v931 = vmul.f32 %v897, %v909
    %v932 = vmul.f32 %v898, %v910
    %v933 = vmul.f32 %v899, %v909
    %v934 = vmul.f32 %v900, %v910
    %v935 = vmul.f32 %v901, %v909
    %v936 = vmul.f32 %v902, %v910
    %v937 = vmul.f32 %v903, %v909
    %v938 = vmul.f32 %v904, %v910
    %v939 = vmul.f32 %v905, %v909
    %v940 = vmul.f32 %v906, %v910
    %v941 = vmul.f32 %v907, %v909
    %v942 = vmul.f32 %v908, %v910
    %v943 = vadd.f32 %v911, %v789
    %v944 = vadd.f32 %v912, %v838
    %v945 = vadd.f32 %v913, %v791
    %v946 = vadd.f32 %v914, %v840
    %v947 = vadd.f32 %v915, %v794
    %v948 = vadd.f32 %v916, %v843
    %v949 = vadd.f32 %v917, %v796
    %v950 = vadd.f32 %v918, %v845
    %v951 = vadd.f32 %v919, %v799
    %v952 = vadd.f32 %v920, %v848
    %v953 = vadd.f32 %v921, %v801
    %v954 = vadd.f32 %v922, %v850
    %v955 = vadd.f32 %v923, %v804
    %v956 = vadd.f32 %v924, %v853
    %v957 = vadd.f32 %v925, %v806
    %v958 = vadd.f32 %v926, %v855
    %v959 = vadd.f32 %v927, %v809
    %v960 = vadd.f32 %v928, %v858
    %v961 = vadd.f32 %v929, %v811
    %v962 = vadd.f32 %v930, %v860
    %v963 = vadd.f32 %v931, %v814
    %v964 = vadd.f32 %v932, %v863
    %v965 = vadd.f32 %v933, %v816
    %v966 = vadd.f32 %v934, %v865
    %v967 = vadd.f32 %v935, %v819
    %v968 = vadd.f32 %v936, %v868
    %v969 = vadd.f32 %v937, %v821
    %v970 = vadd.f32 %v938, %v870
    %v971 = vadd.f32 %v939, %v824
    %v972 = vadd.f32 %v940, %v873
    %v973 = vadd.f32 %v941, %v826
    %v974 = vadd.f32 %v942, %v875
    %v975 = vpack.c.bf16 %v944, %v943
    %v976 = vpack.c.bf16 %v946, %v945
    %v977 = vpack.c.bf16 %v948, %v947
    %v978 = vpack.c.bf16 %v950, %v949
    %v979 = vpack.c.bf16 %v952, %v951
    %v980 = vpack.c.bf16 %v954, %v953
    %v981 = vpack.c.bf16 %v956, %v955
    %v982 = vpack.c.bf16 %v958, %v957
    %v983 = vpack.c.bf16 %v960, %v959
    %v984 = vpack.c.bf16 %v962, %v961
    %v985 = vpack.c.bf16 %v964, %v963
    %v986 = vpack.c.bf16 %v966, %v965
    %v987 = vpack.c.bf16 %v968, %v967
    %v988 = vpack.c.bf16 %v970, %v969
    %v989 = vpack.c.bf16 %v972, %v971
    %v990 = vpack.c.bf16 %v974, %v973
    %991 = vst [vmem:[%s13] sm:$0xff] %v975
    %992 = vst [vmem:[%s13 + $0x8] sm:$0xff] %v976
    %993 = vst [vmem:[%s13 + $0x10] sm:$0xff] %v977
    %994 = vst [vmem:[%s13 + $0x18] sm:$0xff] %v978
    %995 = vst [vmem:[%s13 + $0x20] sm:$0xff] %v979
    %996 = vst [vmem:[%s13 + $0x28] sm:$0xff] %v980
    %997 = vst [vmem:[%s13 + $0x30] sm:$0xff] %v981
    %998 = vst [vmem:[%s13 + $0x38] sm:$0xff] %v982
    %999 = vst [vmem:[%s13 + $0x40] sm:$0xff] %v983
    %1000 = vst [vmem:[%s13 + $0x48] sm:$0xff] %v984
    %1001 = vst [vmem:[%s13 + $0x50] sm:$0xff] %v985
    %1002 = vst [vmem:[%s13 + $0x58] sm:$0xff] %v986
    %1003 = vst [vmem:[%s13 + $0x60] sm:$0xff] %v987
    %1004 = vst [vmem:[%s13 + $0x68] sm:$0xff] %v988
    %1005 = vst [vmem:[%s13 + $0x70] sm:$0xff] %v989
    %1006 = vst [vmem:[%s13 + $0x78] sm:$0xff] %v990
    %v1007 = vld [vmem:[%s10] sm:$0xff]
    %v1008 = vcvt.s32.f32 %v1007
    %1010 = vset.pattern.permute.xlu0 0
    %1011 = vperm.xlu0 %1010, %v1008
    %v1012 = vpop.permute.xlu0 %1011
    %v1014 = vmul.f32 %v1012, %v657
    %v1015 = vmul.f32 %v1012, %v658
    %v1016 = vrot.slane %v1014, 4
    %v1017 = vadd.f32 %v1014, %v1016
    %v1018 = vrot.slane %v1017, 2
    %v1019 = vadd.f32 %v1017, %v1018
    %v1020 = vrot.slane %v1019, 1
    %v1021 = vadd.f32 %v1019, %v1020
    %v1022 = vrot.slane %v1015, 4
    %v1023 = vadd.f32 %v1015, %v1022
    %v1024 = vrot.slane %v1023, 2
    %v1025 = vadd.f32 %v1023, %v1024
    %v1026 = vrot.slane %v1025, 1
    %v1027 = vadd.f32 %v1025, %v1026
    %v1028 = vcvt.s32.f32 %v375
    %v1031 = vrot.slane %v910, 7
    %vm1032 = vcmask 1040384
    %v1033 = vsel %vm1032, %v909, %v1031
    %v1035 = vmul.f32 %v1028, %v1033
    %v1038 = vrot.slane %v1027, 7
    %v1039 = vsel %vm1032, %v1021, %v1038
    %v1041 = vadd.f32 %v1035, %v1039
    %v1042 = vcvt.f32.s32.to.zero.pseudo %v1041
    %v1043 = vlaneseq
    %vm1044 = vcmp.ge.s32.totalorder %v1043, 0
    %vm1045 = vcmp.lt.s32.totalorder %v1043, 256
    %vm1046 = vmand %vm1044, %vm1045
    %1047 = vst.msk [vmem:[%s14] sm:$0x3] %vm1046, %v1042
    // Predicated region
    $region46: #{tpu_custom_call.1} parent=1 // pred_check
      _
    $region47: #{tpu_custom_call.1} parent=1 // pred_check_branch
      %1049 = sbr.rel (0) target = $region49
    $region48: #{tpu_custom_call.1} parent=1 // pred_region
      _
    $region49: #{tpu_custom_call.1} parent=1 // pred_fallthru
      _
    // Predicated region
    $region50: #{tpu_custom_call.1} parent=1 // pred_check
      _
    $region51: #{tpu_custom_call.1} parent=1 // pred_check_branch
      %1051 = sbr.rel (0) target = $region53
    $region52: #{tpu_custom_call.1} parent=1 // pred_region
      %1053 = vsyncadd [#allocation3], 0
      %s1055 = sshll.u32 [#allocation2], 4
      %s1056 = int_to_ptr.vmem [resolvable:$true] %s1055
      %s1057 = sshll.u32 %s12, 4
      %s1058 = int_to_ptr.hbm [resolvable:$true] %s1057
      %1060 = dma.vmem_to_hbm [thread:$0]  %s1056, 128, %s1058, [#allocation3]
    $region53: #{tpu_custom_call.1} parent=1 // pred_fallthru
      _
    // Predicated region
    $region54: #{tpu_custom_call.1} parent=1 // pred_check
      _
    $region55: #{tpu_custom_call.1} parent=1 // pred_check_branch
      %1062 = sbr.rel (0) target = $region57
    $region56: #{tpu_custom_call.1} parent=1 // pred_region
      _
    $region57: #{tpu_custom_call.1} parent=1 // pred_fallthru
      _
    // Predicated region
    $region58: #{tpu_custom_call.1} parent=1 // pred_check
      _
    $region59: #{tpu_custom_call.1} parent=1 // pred_check_branch
      %1064 = sbr.rel (0) target = $region61
    $region60: #{tpu_custom_call.1} parent=1 // pred_region
      _
    $region61: #{tpu_custom_call.1} parent=1 // pred_fallthru
      _
    // Predicated region
    $region62: #{tpu_custom_call.1} parent=1 // pred_check
      _
    $region63: #{tpu_custom_call.1} parent=1 // pred_check_branch
      %1066 = sbr.rel (0) target = $region65
    $region64: #{tpu_custom_call.1} parent=1 // pred_region
      _
    $region65: #{tpu_custom_call.1} parent=1 // pred_fallthru
      _
    // Predicated region
    $region66: #{tpu_custom_call.1} parent=1 // pred_check
      _
    $region67: #{tpu_custom_call.1} parent=1 // pred_check_branch
      %1068 = sbr.rel (0) target = $region69
    $region68: #{tpu_custom_call.1} parent=1 // pred_region
      %1070 = dma.done [#allocation3], 128
    $region69: #{tpu_custom_call.1} parent=1 // pred_fallthru
      _
    // Predicated region
    $region70: #{tpu_custom_call.1} parent=1 // pred_check
      _
    $region71: #{tpu_custom_call.1} parent=1 // pred_check_branch
      %1072 = sbr.rel (0) target = $region73
    $region72: #{tpu_custom_call.1} parent=1 // pred_region
      _
    $region73: #{tpu_custom_call.1} parent=1 // pred_fallthru
      _
    // Predicated region
    $region74: #{tpu_custom_call.1} parent=1 // pred_check
      _
    $region75: #{tpu_custom_call.1} parent=1 // pred_check_branch
      %1074 = sbr.rel (0) target = $region77
    $region76: #{tpu_custom_call.1} parent=1 // pred_region
      _
    $region77: #{tpu_custom_call.1} parent=1 // pred_fallthru
      _
    %1075 = vsyncpa [#allocation3], 1

</llo_original>
